<compile_context>
chip_gen: v6e
topology: v6e:2x2x1
jax: 0.10.0
libtpu: 0.0.40
codegen_flags: <defaults>
</compile_context>

<pallas_src>
import jax
import jax.numpy as jnp
import numpy as np
from jax.experimental import pallas as pl
from jax.experimental.pallas import tpu as pltpu

HIDDEN = 256
TB_MAX = 512  # batch rows per grid step


def critic_kernel(obs_ref, act_ref, w1o_ref, w1a_ref, w2_ref, w3_ref, o_ref):
    # Fused concat:  concat(obs, act) @ W1 == obs @ W1[:d_obs] + act @ W1[d_obs:]
    h1 = jnp.dot(obs_ref[...], w1o_ref[...], preferred_element_type=jnp.float32)
    h1 = h1 + jnp.dot(act_ref[...], w1a_ref[...],
                      preferred_element_type=jnp.float32)
    h1 = jnp.maximum(h1, 0.0)
    h2 = jnp.maximum(
        jnp.dot(h1, w2_ref[...], preferred_element_type=jnp.float32), 0.0)
    # Final 256 -> 1 layer: VPU multiply + lane reduce against a (1, 256) row.
    o_ref[...] = jnp.sum(h2 * w3_ref[...], axis=-1,
                         keepdims=True).astype(o_ref.dtype)


@jax.jit
def critic_forward(observations, actions, w1, w2, w3):
    batch, obs_dim = observations.shape
    act_dim = actions.shape[1]
    hidden = w2.shape[0]

    # Pre-split W1 so the concat is fused into the kernel; store W3 as a row.
    w1_obs = w1[:obs_dim]
    w1_act = w1[obs_dim:]
    w3_row = w3.reshape(1, hidden)

    # Batch tiling: one weight-resident tile of `tb` rows per grid step.
    if batch <= TB_MAX:
        tb = batch
        padded = batch
    else:
        tb = TB_MAX
        padded = pl.cdiv(batch, tb) * tb
        if padded != batch:
            pad = padded - batch
            observations = jnp.pad(observations, ((0, pad), (0, 0)))
            actions = jnp.pad(actions, ((0, pad), (0, 0)))

    grid = (padded // tb,)
    out = pl.pallas_call(
        critic_kernel,
        out_shape=jax.ShapeDtypeStruct((padded, 1), jnp.float32),
        grid_spec=pltpu.PrefetchScalarGridSpec(
            num_scalar_prefetch=0,
            grid=grid,
            in_specs=[
                pl.BlockSpec((tb, obs_dim), lambda i: (i, 0)),
                pl.BlockSpec((tb, act_dim), lambda i: (i, 0)),
                # Constant index_maps -> weights stay VMEM-resident across
                # all batch tiles.
                pl.BlockSpec((obs_dim, hidden), lambda i: (0, 0)),
                pl.BlockSpec((act_dim, hidden), lambda i: (0, 0)),
                pl.BlockSpec((hidden, hidden), lambda i: (0, 0)),
                pl.BlockSpec((1, hidden), lambda i: (0, 0)),
            ],
            out_specs=pl.BlockSpec((tb, 1), lambda i: (i, 0)),
        ),
        compiler_params=pltpu.CompilerParams(
            # Batch tiles are independent -> v7x can run them on both TCs.
            dimension_semantics=("parallel",),
        ),
    )(observations, actions, w1_obs, w1_act, w2, w3_row)
    return out[:batch]


def init_linear_weight(key, in_features, out_features):
    # Matches torch.nn.Linear default init: U(-1/sqrt(fan_in), 1/sqrt(fan_in)).
    bound = 1.0 / np.sqrt(in_features)
    # Stored as (in, out) == transpose of PyTorch's (out, in) weight.
    return jax.random.uniform(
        key, (in_features, out_features), dtype=jnp.float32,
        minval=-bound, maxval=bound,
    )


def _reference(obs, act, w1, w2, w3):
    # Pure-JAX reference with the module's natural formulation.
    x = jnp.concatenate((obs, act), axis=1)
    h = jnp.maximum(x @ w1, 0.0)
    h = jnp.maximum(h @ w2, 0.0)
    return h @ w3


if __name__ == "__main__":
    action_space_size = 8
    observation_state_size = 24
    batch = 8
    in_features = action_space_size + observation_state_size  # 32

    key = jax.random.PRNGKey(0)
    k_obs, k_act, k_w1, k_w2, k_w3 = jax.random.split(key, 5)

    observations = jax.random.normal(
        k_obs, (batch, observation_state_size), dtype=jnp.float32)
    actions = jax.random.normal(
        k_act, (batch, action_space_size), dtype=jnp.float32)

    w1 = init_linear_weight(k_w1, in_features, HIDDEN)
    w2 = init_linear_weight(k_w2, HIDDEN, HIDDEN)
    w3 = init_linear_weight(k_w3, HIDDEN, 1)

    # Small-batch path (single tile).
    out = jax.block_until_ready(critic_forward(observations, actions, w1, w2, w3))
    assert out.shape == (batch, 1)
    ref = _reference(observations, actions, w1, w2, w3)
    # Tolerance covers TPU default matmul precision + summation reassociation
    # from the fused concat / row-reduce final layer.
    np.testing.assert_allclose(np.asarray(out), np.asarray(ref),
                               rtol=2e-2, atol=2e-2)

    # Larger batch: exercises padding / multi-tile grid machinery (with
    # TB_MAX=512 this still fits a single weight-resident tile).
    big = 200
    k_obs2, k_act2 = jax.random.split(jax.random.PRNGKey(1), 2)
    obs2 = jax.random.normal(k_obs2, (big, observation_state_size), jnp.float32)
    act2 = jax.random.normal(k_act2, (big, action_space_size), jnp.float32)
    out2 = jax.block_until_ready(critic_forward(obs2, act2, w1, w2, w3))
    assert out2.shape == (big, 1)
    ref2 = _reference(obs2, act2, w1, w2, w3)
    np.testing.assert_allclose(np.asarray(out2), np.asarray(ref2),
                               rtol=2e-2, atol=2e-2)

    # Multi-tile path: > TB_MAX rows with padding.
    huge = 1100
    k_obs3, k_act3 = jax.random.split(jax.random.PRNGKey(2), 2)
    obs3 = jax.random.normal(k_obs3, (huge, observation_state_size), jnp.float32)
    act3 = jax.random.normal(k_act3, (huge, action_space_size), jnp.float32)
    out3 = jax.block_until_ready(critic_forward(obs3, act3, w1, w2, w3))
    assert out3.shape == (huge, 1)
    ref3 = _reference(obs3, act3, w1, w2, w3)
    np.testing.assert_allclose(np.asarray(out3), np.asarray(ref3),
                               rtol=2e-2, atol=2e-2)

    print("KERNEL_OK")
</pallas_src>

<mosaic_0001>
module attributes {stable_mosaic.version = 11 : i64} {
  func.func @critic_kernel(%arg0: i32, %arg1: memref<8x24xf32, #tpu.memory_space<vmem>>, %arg2: memref<8x8xf32, #tpu.memory_space<vmem>>, %arg3: memref<24x256xf32, #tpu.memory_space<vmem>>, %arg4: memref<8x256xf32, #tpu.memory_space<vmem>>, %arg5: memref<256x256xf32, #tpu.memory_space<vmem>>, %arg6: memref<1x256xf32, #tpu.memory_space<vmem>>, %arg7: memref<8x1xf32, #tpu.memory_space<vmem>>) attributes {dimension_semantics = [#tpu.dimension_semantics<parallel>], iteration_bounds = array<i64: 1>, scalar_prefetch = 0 : i64, scratch_operands = 0 : i64, tpu.core_type = #tpu.core_type<tc>, window_params = [{transform_indices = @transform_0, window_bounds = array<i64: 8, 24>}, {transform_indices = @transform_1, window_bounds = array<i64: 8, 8>}, {pipeline_mode = #tpu.pipeline_mode<synchronous>, transform_indices = @transform_2, window_bounds = array<i64: 24, 256>}, {pipeline_mode = #tpu.pipeline_mode<synchronous>, transform_indices = @transform_3, window_bounds = array<i64: 8, 256>}, {pipeline_mode = #tpu.pipeline_mode<synchronous>, transform_indices = @transform_4, window_bounds = array<i64: 256, 256>}, {pipeline_mode = #tpu.pipeline_mode<synchronous>, transform_indices = @transform_5, window_bounds = array<i64: 1, 256>}, {transform_indices = @transform_6, window_bounds = array<i64: 8, 1>}]} {
    %c0 = arith.constant 0 : index
    %c0_0 = arith.constant 0 : index
    %0 = vector.load %arg1[%c0, %c0_0] : memref<8x24xf32, #tpu.memory_space<vmem>>, vector<8x24xf32>
    %c0_1 = arith.constant 0 : index
    %c0_2 = arith.constant 0 : index
    %1 = vector.load %arg3[%c0_1, %c0_2] : memref<24x256xf32, #tpu.memory_space<vmem>>, vector<24x256xf32>
    %cst = arith.constant dense<0.000000e+00> : vector<8x256xf32>
    %2 = tpu.matmul %0, %1, %cst {dimension_numbers = #tpu.dot_dimension_numbers<[1], [0], [0], [1], [0, 0, 1, 1], [], []>} : vector<8x24xf32>, vector<24x256xf32>, vector<8x256xf32> -> vector<8x256xf32>
    %c0_3 = arith.constant 0 : index
    %c0_4 = arith.constant 0 : index
    %3 = vector.load %arg2[%c0_3, %c0_4] : memref<8x8xf32, #tpu.memory_space<vmem>>, vector<8x8xf32>
    %c0_5 = arith.constant 0 : index
    %c0_6 = arith.constant 0 : index
    %4 = vector.load %arg4[%c0_5, %c0_6] : memref<8x256xf32, #tpu.memory_space<vmem>>, vector<8x256xf32>
    %cst_7 = arith.constant dense<0.000000e+00> : vector<8x256xf32>
    %5 = tpu.matmul %3, %4, %cst_7 {dimension_numbers = #tpu.dot_dimension_numbers<[1], [0], [0], [1], [0, 0, 1, 1], [], []>} : vector<8x8xf32>, vector<8x256xf32>, vector<8x256xf32> -> vector<8x256xf32>
    %6 = arith.addf %2, %5 : vector<8x256xf32>
    %cst_8 = arith.constant 0.000000e+00 : f32
    %7 = vector.broadcast %cst_8 : f32 to vector<8x256xf32>
    %8 = arith.maximumf %6, %7 : vector<8x256xf32>
    %c0_9 = arith.constant 0 : index
    %c0_10 = arith.constant 0 : index
    %9 = vector.load %arg5[%c0_9, %c0_10] : memref<256x256xf32, #tpu.memory_space<vmem>>, vector<256x256xf32>
    %cst_11 = arith.constant dense<0.000000e+00> : vector<8x256xf32>
    %10 = tpu.matmul %8, %9, %cst_11 {dimension_numbers = #tpu.dot_dimension_numbers<[1], [0], [0], [1], [0, 0, 1, 1], [], []>} : vector<8x256xf32>, vector<256x256xf32>, vector<8x256xf32> -> vector<8x256xf32>
    %cst_12 = arith.constant 0.000000e+00 : f32
    %11 = vector.broadcast %cst_12 : f32 to vector<8x256xf32>
    %12 = arith.maximumf %10, %11 : vector<8x256xf32>
    %c0_13 = arith.constant 0 : index
    %c0_14 = arith.constant 0 : index
    %13 = vector.load %arg6[%c0_13, %c0_14] : memref<1x256xf32, #tpu.memory_space<vmem>>, vector<1x256xf32>
    %14 = vector.broadcast %13 : vector<1x256xf32> to vector<8x256xf32>
    %15 = arith.mulf %12, %14 : vector<8x256xf32>
    %cst_15 = arith.constant dense<0.000000e+00> : vector<8xf32>
    %16 = vector.multi_reduction <add>, %15, %cst_15 [1] : vector<8x256xf32> to vector<8xf32>
    %17 = vector.shape_cast %16 : vector<8xf32> to vector<8x1xf32>
    %c0_16 = arith.constant 0 : index
    %c0_17 = arith.constant 0 : index
    %18 = vector.load %arg7[%c0_16, %c0_17] : memref<8x1xf32, #tpu.memory_space<vmem>>, vector<8x1xf32>
    tpu.vector_store %arg7[%c0_16, %c0_17], %17 {strides = array<i32>} : memref<8x1xf32, #tpu.memory_space<vmem>>, vector<8x1xf32>,
    return
  }
  func.func @transform_0(%arg0: i32) -> (i32, i32) {
    %c0_i32 = arith.constant 0 : i32
    %c0_i32_0 = arith.constant 0 : i32
    return %arg0, %c0_i32 : i32, i32
  }
  func.func @transform_1(%arg0: i32) -> (i32, i32) {
    %c0_i32 = arith.constant 0 : i32
    %c0_i32_0 = arith.constant 0 : i32
    return %arg0, %c0_i32 : i32, i32
  }
  func.func @transform_2(%arg0: i32) -> (i32, i32) {
    %c0_i32 = arith.constant 0 : i32
    %c0_i32_0 = arith.constant 0 : i32
    %c0_i32_1 = arith.constant 0 : i32
    return %c0_i32, %c0_i32_0 : i32, i32
  }
  func.func @transform_3(%arg0: i32) -> (i32, i32) {
    %c0_i32 = arith.constant 0 : i32
    %c0_i32_0 = arith.constant 0 : i32
    %c0_i32_1 = arith.constant 0 : i32
    return %c0_i32, %c0_i32_0 : i32, i32
  }
  func.func @transform_4(%arg0: i32) -> (i32, i32) {
    %c0_i32 = arith.constant 0 : i32
    %c0_i32_0 = arith.constant 0 : i32
    %c0_i32_1 = arith.constant 0 : i32
    return %c0_i32, %c0_i32_0 : i32, i32
  }
  func.func @transform_5(%arg0: i32) -> (i32, i32) {
    %c0_i32 = arith.constant 0 : i32
    %c0_i32_0 = arith.constant 0 : i32
    %c0_i32_1 = arith.constant 0 : i32
    return %c0_i32, %c0_i32_0 : i32, i32
  }
  func.func @transform_6(%arg0: i32) -> (i32, i32) {
    %c0_i32 = arith.constant 0 : i32
    %c0_i32_0 = arith.constant 0 : i32
    return %arg0, %c0_i32 : i32, i32
  }
}

</mosaic_0001>

<llo_original>
// kernel: critic_forward.1
$region0: #{critic_forward.1}
  #allocation0 [shape = 'u32[]', space=smem, size = 0x4, offset = 0x4, fixed_abs, tag = 'smem constant byte address 0x4 - core index']
  #allocation1 [shape = 'u32[144,128]{1,0:T(1,128)}', space=vmem, size = 0x12000, scoped, tag = 'internal scratch']
  %s0 = inlined_call_operand.vmem [shape: f32[8,24], index: 0, kind: input, shape index: {}]
  %s1 = inlined_call_operand.vmem [shape: f32[8,8], index: 1, kind: input, shape index: {}]
  %s2 = inlined_call_operand.vmem [shape: f32[24,256], index: 2, kind: input, shape index: {}]
  %s3 = inlined_call_operand.vmem [shape: f32[8,256], index: 3, kind: input, shape index: {}]
  %s4 = inlined_call_operand.hbm [shape: f32[256,256], index: 4, kind: input, shape index: {}]
  %s5 = inlined_call_operand.vmem [shape: f32[1,256], index: 5, kind: input, shape index: {}]
  %s6 = inlined_call_operand.vmem [shape: f32[8,1], index: 6, kind: output, shape index: {}]
  %s7 = sld [smem:[#allocation0]]
  $region38: #{critic_forward.1} parent=0
    _
  %s9 = ssub.s32 1, %s7
  %s10 = scalar_select 0, %s9, %s7
  $region1: #{critic_forward.1} parent=0
    #allocation2 [shape = 'u8[262144]{0}', space=vmem, size = 0x40000, scoped, tag = 'input window, operand 4, single buffered']
    #allocation3 [shape = 's32[1]{0}', space=sflag, size = 0x4, scoped, tag = 'scoped memory for critic_forward.1']
    %11 = vsyncpa [#allocation3], 0
    // Predicated region
    $region2: #{critic_forward.1} parent=1 // pred_check
      _
    $region3: #{critic_forward.1} parent=1 // pred_check_branch
      %13 = sbr.rel (0) target = $region5
    $region4: #{critic_forward.1} parent=1 // pred_region
      _
    $region5: #{critic_forward.1} parent=1 // pred_fallthru
      _
    // Predicated region
    $region6: #{critic_forward.1} parent=1 // pred_check
      _
    $region7: #{critic_forward.1} parent=1 // pred_check_branch
      %15 = sbr.rel (0) target = $region9
    $region8: #{critic_forward.1} parent=1 // pred_region
      _
    $region9: #{critic_forward.1} parent=1 // pred_fallthru
      _
    // Predicated region
    $region10: #{critic_forward.1} parent=1 // pred_check
      _
    $region11: #{critic_forward.1} parent=1 // pred_check_branch
      %17 = sbr.rel (0) target = $region13
    $region12: #{critic_forward.1} parent=1 // pred_region
      _
    $region13: #{critic_forward.1} parent=1 // pred_fallthru
      _
    // Predicated region
    $region14: #{critic_forward.1} parent=1 // pred_check
      _
    $region15: #{critic_forward.1} parent=1 // pred_check_branch
      %19 = sbr.rel (0) target = $region17
    $region16: #{critic_forward.1} parent=1 // pred_region
      _
    $region17: #{critic_forward.1} parent=1 // pred_fallthru
      _
    // Predicated region
    $region18: #{critic_forward.1} parent=1 // pred_check
      _
    $region19: #{critic_forward.1} parent=1 // pred_check_branch
      %21 = sbr.rel (0) target = $region21
    $region20: #{critic_forward.1} parent=1 // pred_region
      %s23 = ssub.s32 8192, 8192
      %24 = vsyncadd [#allocation3], %s23
      %s25 = sshll.u32 [#allocation2], 4
      %s26 = int_to_ptr.vmem [resolvable:$true] %s25
      %31 = dma.hbm_to_vmem [thread:$0]  %s4, 8192, %s26, [#allocation3], 256, 256, 16
    $region21: #{critic_forward.1} parent=1 // pred_fallthru
      _
    // Predicated region
    $region22: #{critic_forward.1} parent=1 // pred_check
      _
    $region23: #{critic_forward.1} parent=1 // pred_check_branch
      %33 = sbr.rel (0) target = $region25
    $region24: #{critic_forward.1} parent=1 // pred_region
      _
    $region25: #{critic_forward.1} parent=1 // pred_fallthru
      _
    // Predicated region
    $region26: #{critic_forward.1} parent=1 // pred_check
      _
    $region27: #{critic_forward.1} parent=1 // pred_check_branch
      %35 = sbr.rel (0) target = $region29
    $region28: #{critic_forward.1} parent=1 // pred_region
      %36 = dma.done [#allocation3], 8192
    $region29: #{critic_forward.1} parent=1 // pred_fallthru
      _
    %v37 = vld [vmem:[%s0] sm:$0xff]
    %v38 = vld [vmem:[%s2] sm:$0xff]
    %v39 = vld [vmem:[%s2 + $0x8] sm:$0xff]
    %v40 = vld [vmem:[%s2 + $0x10] sm:$0xff]
    %v41 = vld [vmem:[%s2 + $0x18] sm:$0xff]
    %v42 = vld [vmem:[%s2 + $0x20] sm:$0xff]
    %v43 = vld [vmem:[%s2 + $0x28] sm:$0xff]
    %v44 = vld [vmem:[%s1] sm:$0xff]
    %v45 = vld [vmem:[%s3] sm:$0xff]
    %v46 = vld [vmem:[%s3 + $0x8] sm:$0xff]
    %vm47 = vcmask 64512
    %v49 = vsel %vm47, %v44, 0
    %51 = vmatprep.subr.mxu0 0.0
    %52 = vmatpush1.msra.mxu0 0.0
    %53 = vmatprep.subr.mxu0 0.0
    %54 = vmatpush1.msra.mxu0 0.0
    %55 = vmatprep.subr.mxu0 0.0
    %56 = vmatpush1.msra.mxu0 0.0
    %57 = vmatprep.subr.mxu0 0.0
    %58 = vmatpush1.msra.mxu0 0.0
    %59 = vmatprep.subr.mxu0 0.0
    %60 = vmatpush1.msra.mxu0 0.0
    %61 = vmatprep.subr.mxu0 0.0
    %62 = vmatpush1.msra.mxu0 0.0
    %63 = vmatprep.subr.mxu0 0.0
    %64 = vmatpush1.msra.mxu0 0.0
    %65 = vmatprep.subr.mxu0 0.0
    %66 = vmatpush1.msra.mxu0 0.0
    %67 = vmatprep.subr.mxu0 0.0
    %68 = vmatpush1.msra.mxu0 0.0
    %69 = vmatprep.subr.mxu0 0.0
    %70 = vmatpush1.msra.mxu0 0.0
    %71 = vmatprep.subr.mxu0 0.0
    %72 = vmatpush1.msra.mxu0 0.0
    %73 = vmatprep.subr.mxu0 0.0
    %74 = vmatpush1.msra.mxu0 0.0
    %75 = vmatprep.subr.mxu0 0.0
    %76 = vmatpush1.msra.mxu0 0.0
    %77 = vmatprep.subr.mxu0 0.0
    %78 = vmatpush1.msra.mxu0 0.0
    %79 = vmatprep.subr.mxu0 0.0
    %80 = vmatpush1.msra.mxu0 0.0
    %81 = vmatprep.subr.mxu0 %v46
    %82 = vmatpush1.msra.mxu0 %v45
    %83 = vmatprep.subr.mxu0 0.0
    %84 = vmatpush2.msra.mxu0 0.0
    %85 = vmatprep.subr.mxu0 0.0
    %86 = vmatpush2.msra.mxu0 0.0
    %87 = vmatprep.subr.mxu0 0.0
    %88 = vmatpush2.msra.mxu0 0.0
    %89 = vmatprep.subr.mxu0 0.0
    %90 = vmatpush2.msra.mxu0 0.0
    %91 = vmatprep.subr.mxu0 0.0
    %92 = vmatpush2.msra.mxu0 0.0
    %93 = vmatprep.subr.mxu0 0.0
    %94 = vmatpush2.msra.mxu0 0.0
    %95 = vmatprep.subr.mxu0 0.0
    %96 = vmatpush2.msra.mxu0 0.0
    %97 = vmatprep.subr.mxu0 0.0
    %98 = vmatpush2.msra.mxu0 0.0
    %99 = vmatprep.subr.mxu0 0.0
    %100 = vmatpush2.msra.mxu0 0.0
    %101 = vmatprep.subr.mxu0 0.0
    %102 = vmatpush2.msra.mxu0 0.0
    %103 = vmatprep.subr.mxu0 0.0
    %104 = vmatpush2.msra.mxu0 0.0
    %105 = vmatprep.subr.mxu0 0.0
    %106 = vmatpush2.msra.mxu0 0.0
    %107 = vmatprep.subr.mxu0 0.0
    %108 = vmatpush2.msra.mxu0 0.0
    %109 = vmatprep.subr.mxu0 0.0
    %110 = vmatpush2.msra.mxu0 0.0
    %111 = vmatprep.subr.mxu0 0.0
    %112 = vmatpush2.msra.mxu0 0.0
    %113 = vmatprep.subr.mxu0 0.0
    %114 = vmatpush2.msra.mxu0 0.0
    %115 = vmatprep.mubr.f32.mxu0 0.0
    %116 = vmatmul.mubr.f32.gmra.mxu0 %v49
    %v117 = vpop.f32.mrf.mxu0
    %v118 = vadd.f32 0.0, %v117
    %v119 = vpop.f32.mrf.mxu0
    %v120 = vadd.f32 0.0, %v119
    %121 = vdwg.mxu0
    %vm122 = vcmask 195584
    %v124 = vsel %vm122, %v37, 0
    %126 = vmatprep.subr.mxu0 0.0
    %127 = vmatpush1.msra.mxu0 0.0
    %128 = vmatprep.subr.mxu0 0.0
    %129 = vmatpush1.msra.mxu0 0.0
    %130 = vmatprep.subr.mxu0 0.0
    %131 = vmatpush1.msra.mxu0 0.0
    %132 = vmatprep.subr.mxu0 0.0
    %133 = vmatpush1.msra.mxu0 0.0
    %134 = vmatprep.subr.mxu0 0.0
    %135 = vmatpush1.msra.mxu0 0.0
    %136 = vmatprep.subr.mxu0 0.0
    %137 = vmatpush1.msra.mxu0 0.0
    %138 = vmatprep.subr.mxu0 0.0
    %139 = vmatpush1.msra.mxu0 0.0
    %140 = vmatprep.subr.mxu0 0.0
    %141 = vmatpush1.msra.mxu0 0.0
    %142 = vmatprep.subr.mxu0 0.0
    %143 = vmatpush1.msra.mxu0 0.0
    %144 = vmatprep.subr.mxu0 0.0
    %145 = vmatpush1.msra.mxu0 0.0
    %146 = vmatprep.subr.mxu0 0.0
    %147 = vmatpush1.msra.mxu0 0.0
    %148 = vmatprep.subr.mxu0 0.0
    %149 = vmatpush1.msra.mxu0 0.0
    %150 = vmatprep.subr.mxu0 0.0
    %151 = vmatpush1.msra.mxu0 0.0
    %152 = vmatprep.subr.mxu0 %v43
    %153 = vmatpush1.msra.mxu0 %v42
    %154 = vmatprep.subr.mxu0 %v41
    %155 = vmatpush1.msra.mxu0 %v40
    %156 = vmatprep.subr.mxu0 %v39
    %157 = vmatpush1.msra.mxu0 %v38
    %158 = vmatprep.subr.mxu0 0.0
    %159 = vmatpush2.msra.mxu0 0.0
    %160 = vmatprep.subr.mxu0 0.0
    %161 = vmatpush2.msra.mxu0 0.0
    %162 = vmatprep.subr.mxu0 0.0
    %163 = vmatpush2.msra.mxu0 0.0
    %164 = vmatprep.subr.mxu0 0.0
    %165 = vmatpush2.msra.mxu0 0.0
    %166 = vmatprep.subr.mxu0 0.0
    %167 = vmatpush2.msra.mxu0 0.0
    %168 = vmatprep.subr.mxu0 0.0
    %169 = vmatpush2.msra.mxu0 0.0
    %170 = vmatprep.subr.mxu0 0.0
    %171 = vmatpush2.msra.mxu0 0.0
    %172 = vmatprep.subr.mxu0 0.0
    %173 = vmatpush2.msra.mxu0 0.0
    %174 = vmatprep.subr.mxu0 0.0
    %175 = vmatpush2.msra.mxu0 0.0
    %176 = vmatprep.subr.mxu0 0.0
    %177 = vmatpush2.msra.mxu0 0.0
    %178 = vmatprep.subr.mxu0 0.0
    %179 = vmatpush2.msra.mxu0 0.0
    %180 = vmatprep.subr.mxu0 0.0
    %181 = vmatpush2.msra.mxu0 0.0
    %182 = vmatprep.subr.mxu0 0.0
    %183 = vmatpush2.msra.mxu0 0.0
    %184 = vmatprep.subr.mxu0 0.0
    %185 = vmatpush2.msra.mxu0 0.0
    %186 = vmatprep.subr.mxu0 0.0
    %187 = vmatpush2.msra.mxu0 0.0
    %188 = vmatprep.subr.mxu0 0.0
    %189 = vmatpush2.msra.mxu0 0.0
    %190 = vmatprep.mubr.f32.mxu0 0.0
    %191 = vmatmul.mubr.f32.gmra.mxu0 %v124
    %v192 = vpop.f32.mrf.mxu0
    %v193 = vadd.f32 %v118, %v192
    %v194 = vpop.f32.mrf.mxu0
    %v195 = vadd.f32 %v120, %v194
    %196 = vdwg.mxu0
    %v197 = vmax.f32 %v193, 0.0
    %v198 = vmax.f32 %v195, 0.0
    %v199 = vld [vmem:[#allocation2] sm:$0xff]
    %v200 = vld [vmem:[#allocation2 + $0x8] sm:$0xff]
    %v201 = vld [vmem:[#allocation2 + $0x10] sm:$0xff]
    %v202 = vld [vmem:[#allocation2 + $0x18] sm:$0xff]
    %v203 = vld [vmem:[#allocation2 + $0x20] sm:$0xff]
    %v204 = vld [vmem:[#allocation2 + $0x28] sm:$0xff]
    %v205 = vld [vmem:[#allocation2 + $0x30] sm:$0xff]
    %v206 = vld [vmem:[#allocation2 + $0x38] sm:$0xff]
    %v207 = vld [vmem:[#allocation2 + $0x40] sm:$0xff]
    %v208 = vld [vmem:[#allocation2 + $0x48] sm:$0xff]
    %v209 = vld [vmem:[#allocation2 + $0x50] sm:$0xff]
    %v210 = vld [vmem:[#allocation2 + $0x58] sm:$0xff]
    %v211 = vld [vmem:[#allocation2 + $0x60] sm:$0xff]
    %v212 = vld [vmem:[#allocation2 + $0x68] sm:$0xff]
    %v213 = vld [vmem:[#allocation2 + $0x70] sm:$0xff]
    %v214 = vld [vmem:[#allocation2 + $0x78] sm:$0xff]
    %v215 = vld [vmem:[#allocation2 + $0x80] sm:$0xff]
    %v216 = vld [vmem:[#allocation2 + $0x88] sm:$0xff]
    %v217 = vld [vmem:[#allocation2 + $0x90] sm:$0xff]
    %v218 = vld [vmem:[#allocation2 + $0x98] sm:$0xff]
    %v219 = vld [vmem:[#allocation2 + $0xa0] sm:$0xff]
    %v220 = vld [vmem:[#allocation2 + $0xa8] sm:$0xff]
    %v221 = vld [vmem:[#allocation2 + $0xb0] sm:$0xff]
    %v222 = vld [vmem:[#allocation2 + $0xb8] sm:$0xff]
    %v223 = vld [vmem:[#allocation2 + $0xc0] sm:$0xff]
    %v224 = vld [vmem:[#allocation2 + $0xc8] sm:$0xff]
    %v225 = vld [vmem:[#allocation2 + $0xd0] sm:$0xff]
    %v226 = vld [vmem:[#allocation2 + $0xd8] sm:$0xff]
    %v227 = vld [vmem:[#allocation2 + $0xe0] sm:$0xff]
    %v228 = vld [vmem:[#allocation2 + $0xe8] sm:$0xff]
    %v229 = vld [vmem:[#allocation2 + $0xf0] sm:$0xff]
    %v230 = vld [vmem:[#allocation2 + $0xf8] sm:$0xff]
    %v231 = vld [vmem:[#allocation2 + $0x100] sm:$0xff]
    %v232 = vld [vmem:[#allocation2 + $0x108] sm:$0xff]
    %v233 = vld [vmem:[#allocation2 + $0x110] sm:$0xff]
    %v234 = vld [vmem:[#allocation2 + $0x118] sm:$0xff]
    %v235 = vld [vmem:[#allocation2 + $0x120] sm:$0xff]
    %v236 = vld [vmem:[#allocation2 + $0x128] sm:$0xff]
    %v237 = vld [vmem:[#allocation2 + $0x130] sm:$0xff]
    %v238 = vld [vmem:[#allocation2 + $0x138] sm:$0xff]
    %v239 = vld [vmem:[#allocation2 + $0x140] sm:$0xff]
    %v240 = vld [vmem:[#allocation2 + $0x148] sm:$0xff]
    %v241 = vld [vmem:[#allocation2 + $0x150] sm:$0xff]
    %v242 = vld [vmem:[#allocation2 + $0x158] sm:$0xff]
    %v243 = vld [vmem:[#allocation2 + $0x160] sm:$0xff]
    %v244 = vld [vmem:[#allocation2 + $0x168] sm:$0xff]
    %v245 = vld [vmem:[#allocation2 + $0x170] sm:$0xff]
    %v246 = vld [vmem:[#allocation2 + $0x178] sm:$0xff]
    %v247 = vld [vmem:[#allocation2 + $0x180] sm:$0xff]
    %v248 = vld [vmem:[#allocation2 + $0x188] sm:$0xff]
    %v249 = vld [vmem:[#allocation2 + $0x190] sm:$0xff]
    %v250 = vld [vmem:[#allocation2 + $0x198] sm:$0xff]
    %v251 = vld [vmem:[#allocation2 + $0x1a0] sm:$0xff]
    %v252 = vld [vmem:[#allocation2 + $0x1a8] sm:$0xff]
    %v253 = vld [vmem:[#allocation2 + $0x1b0] sm:$0xff]
    %v254 = vld [vmem:[#allocation2 + $0x1b8] sm:$0xff]
    %v255 = vld [vmem:[#allocation2 + $0x1c0] sm:$0xff]
    %v256 = vld [vmem:[#allocation2 + $0x1c8] sm:$0xff]
    %v257 = vld [vmem:[#allocation2 + $0x1d0] sm:$0xff]
    %v258 = vld [vmem:[#allocation2 + $0x1d8] sm:$0xff]
    %v259 = vld [vmem:[#allocation2 + $0x1e0] sm:$0xff]
    %v260 = vld [vmem:[#allocation2 + $0x1e8] sm:$0xff]
    %v261 = vld [vmem:[#allocation2 + $0x1f0] sm:$0xff]
    %v262 = vld [vmem:[#allocation2 + $0x1f8] sm:$0xff]
    %263 = vmatprep.subr.mxu0 %v230
    %264 = vmatpush1.msra.mxu0 %v229
    %265 = vmatprep.subr.mxu0 %v228
    %266 = vmatpush1.msra.mxu0 %v227
    %267 = vmatprep.subr.mxu0 %v226
    %268 = vmatpush1.msra.mxu0 %v225
    %269 = vmatprep.subr.mxu0 %v224
    %270 = vmatpush1.msra.mxu0 %v223
    %271 = vmatprep.subr.mxu0 %v222
    %272 = vmatpush1.msra.mxu0 %v221
    %273 = vmatprep.subr.mxu0 %v220
    %274 = vmatpush1.msra.mxu0 %v219
    %275 = vmatprep.subr.mxu0 %v218
    %276 = vmatpush1.msra.mxu0 %v217
    %277 = vmatprep.subr.mxu0 %v216
    %278 = vmatpush1.msra.mxu0 %v215
    %279 = vmatprep.subr.mxu0 %v214
    %280 = vmatpush1.msra.mxu0 %v213
    %281 = vmatprep.subr.mxu0 %v212
    %282 = vmatpush1.msra.mxu0 %v211
    %283 = vmatprep.subr.mxu0 %v210
    %284 = vmatpush1.msra.mxu0 %v209
    %285 = vmatprep.subr.mxu0 %v208
    %286 = vmatpush1.msra.mxu0 %v207
    %287 = vmatprep.subr.mxu0 %v206
    %288 = vmatpush1.msra.mxu0 %v205
    %289 = vmatprep.subr.mxu0 %v204
    %290 = vmatpush1.msra.mxu0 %v203
    %291 = vmatprep.subr.mxu0 %v202
    %292 = vmatpush1.msra.mxu0 %v201
    %293 = vmatprep.subr.mxu0 %v200
    %294 = vmatpush1.msra.mxu0 %v199
    %295 = vmatprep.subr.mxu0 %v262
    %296 = vmatpush2.msra.mxu0 %v261
    %297 = vmatprep.subr.mxu0 %v260
    %298 = vmatpush2.msra.mxu0 %v259
    %299 = vmatprep.subr.mxu0 %v258
    %300 = vmatpush2.msra.mxu0 %v257
    %301 = vmatprep.subr.mxu0 %v256
    %302 = vmatpush2.msra.mxu0 %v255
    %303 = vmatprep.subr.mxu0 %v254
    %304 = vmatpush2.msra.mxu0 %v253
    %305 = vmatprep.subr.mxu0 %v252
    %306 = vmatpush2.msra.mxu0 %v251
    %307 = vmatprep.subr.mxu0 %v250
    %308 = vmatpush2.msra.mxu0 %v249
    %309 = vmatprep.subr.mxu0 %v248
    %310 = vmatpush2.msra.mxu0 %v247
    %311 = vmatprep.subr.mxu0 %v246
    %312 = vmatpush2.msra.mxu0 %v245
    %313 = vmatprep.subr.mxu0 %v244
    %314 = vmatpush2.msra.mxu0 %v243
    %315 = vmatprep.subr.mxu0 %v242
    %316 = vmatpush2.msra.mxu0 %v241
    %317 = vmatprep.subr.mxu0 %v240
    %318 = vmatpush2.msra.mxu0 %v239
    %319 = vmatprep.subr.mxu0 %v238
    %320 = vmatpush2.msra.mxu0 %v237
    %321 = vmatprep.subr.mxu0 %v236
    %322 = vmatpush2.msra.mxu0 %v235
    %323 = vmatprep.subr.mxu0 %v234
    %324 = vmatpush2.msra.mxu0 %v233
    %325 = vmatprep.subr.mxu0 %v232
    %326 = vmatpush2.msra.mxu0 %v231
    %327 = vmatprep.mubr.f32.mxu0 %v198
    %328 = vmatmul.mubr.f32.gmra.mxu0 %v197
    %v329 = vpop.f32.mrf.mxu0
    %v330 = vadd.f32 0.0, %v329
    %v331 = vpop.f32.mrf.mxu0
    %v332 = vadd.f32 0.0, %v331
    %333 = vdwg.mxu0
    %v334 = vmax.f32 %v330, 0.0
    %v335 = vmax.f32 %v332, 0.0
    %v336 = vld [vmem:[%s5] sm:$0x3]
    %v338 = vlaneseq
    %v339 = vshrl.u32 %v338, 7
    %v340 = vsub.s32 0, %v339
    %v341 = vrot.slane %v336, %v340
    %v342 = vlaneseq
    %v343 = vshrl.u32 %v342, 7
    %v344 = vsub.s32 1, %v343
    %v345 = vrot.slane %v336, %v344
    %v348 = vmul.f32 %v334, %v341
    %v349 = vmul.f32 %v335, %v345
    %v350 = vadd.f32 %v348, %v349
    %351 = vadd.xlane.f32.xlu0 %v350
    %v352 = vpop.xlane.xlu0 %351
    %vm353 = vcmask 7168
    %354 = vst.msk [vmem:[%s6] sm:$0xff] %vm353, %v352
    // Predicated region
    $region30: #{critic_forward.1} parent=1 // pred_check
      _
    $region31: #{critic_forward.1} parent=1 // pred_check_branch
      %356 = sbr.rel (0) target = $region33
    $region32: #{critic_forward.1} parent=1 // pred_region
      _
    $region33: #{critic_forward.1} parent=1 // pred_fallthru
      _
    // Predicated region
    $region34: #{critic_forward.1} parent=1 // pred_check
      _
    $region35: #{critic_forward.1} parent=1 // pred_check_branch
      %358 = sbr.rel (0) target = $region37
    $region36: #{critic_forward.1} parent=1 // pred_region
      _
    $region37: #{critic_forward.1} parent=1 // pred_fallthru
      _
    %359 = vsyncpa [#allocation3], 1

</llo_original>
